<compile_context>
chip_gen: v5e
topology: v5e:2x2
jax: 0.10.0
libtpu: 0.0.40
codegen_flags: <defaults>
</compile_context>

<pallas_src>
import functools

import jax
import jax.numpy as jnp
from jax.experimental import pallas as pl
from jax.experimental.pallas import tpu as pltpu


def _symbol_game_kernel(x_ref, w_ref, b_ref, msg_ref, *loss_refs,
                        compute_loss, batch_size, tile_b):
    """One batch tile:
       logits = x @ W + b ; message = log_softmax(logits, dim=1);
       receiver_output = message (identity receiver);
       optional: partial_sum = sum over valid rows of (x - message)^2."""
    x = x_ref[...]                                   # (TB, F) input dtype (f32 or bf16)
    w = w_ref[...]                                   # (F, V)
    b = b_ref[...].astype(jnp.float32)               # (1, V)

    # Sender: Linear (MXU, f32 accumulation) + LogSoftmax(dim=1) (VPU/EUP).
    logits = jnp.dot(x, w, preferred_element_type=jnp.float32) + b    # (TB, V) f32
    m = jnp.max(logits, axis=-1, keepdims=True)
    shifted = logits - m
    lse = jnp.log(jnp.sum(jnp.exp(shifted), axis=-1, keepdims=True))
    log_probs = shifted - lse                                         # (TB, V) f32

    # Receiver: identity -> receiver_output == message
    msg_ref[...] = log_probs.astype(msg_ref.dtype)

    if compute_loss:
        loss_ref = loss_refs[0]
        # Mask rows past the true batch size (ragged last tile reads undefined data).
        i = pl.program_id(0)
        row = i * tile_b + jax.lax.broadcasted_iota(jnp.int32, (tile_b, 1), 0)
        valid = row < batch_size                                      # (TB, 1)
        diff = x.astype(jnp.float32) - log_probs                      # requires F == V
        sq = jnp.where(valid, diff * diff, 0.0)
        loss_ref[0, 0] = jnp.sum(sq)                                  # per-tile partial sum


def symbol_game_gs_forward(sender_input, weight_t, bias, labels=None):
    """Forward pass of SymbolGameGS.

    sender_input : (B, F) float32/bfloat16
    weight_t     : (F, V) same dtype   (transposed nn.Linear weight)
    bias         : (V,)   float32
    labels       : optional; if None, returns receiver_output (the log-probs),
                   otherwise returns (loss.mean(), {}).
    """
    B, F = sender_input.shape
    Fw, V = weight_t.shape
    assert Fw == F
    compute_loss = labels is not None
    if compute_loss:
        assert F == V, "identity receiver + mse loss requires features == vocab"

    bias2d = bias.reshape(1, V).astype(jnp.float32)

    # Batch tile: biggest that is still a legal block (full dim if small, else 512
    # which is a multiple of both 128 (v5e MXU) and 256 (v6e/v7x MXU)).
    TB = B if B <= 512 else 512
    num_tiles = pl.cdiv(B, TB)

    itemsize = jnp.dtype(sender_input.dtype).itemsize
    # 2x double-buffered x and msg tiles + resident weight/bias + headroom;
    # keep well under the v7x 64 MiB physical / 32 MiB default scoped VMEM.
    vmem_bytes = (2 * TB * F * itemsize + 2 * TB * V * itemsize
                  + F * V * itemsize + 4 * V + (2 << 20))
    vmem_limit = int(min(max(vmem_bytes, 4 << 20), 48 << 20))

    kernel = functools.partial(_symbol_game_kernel,
                               compute_loss=compute_loss,
                               batch_size=B, tile_b=TB)

    out_shape = [jax.ShapeDtypeStruct((B, V), sender_input.dtype)]
    out_specs = [pl.BlockSpec((TB, V), lambda i: (i, 0))]
    if compute_loss:
        out_shape.append(jax.ShapeDtypeStruct((num_tiles, 1), jnp.float32))
        out_specs.append(pl.BlockSpec((1, 1), lambda i: (i, 0),
                                      memory_space=pltpu.MemorySpace.SMEM))

    outs = pl.pallas_call(
        kernel,
        grid=(num_tiles,),
        out_shape=tuple(out_shape),
        in_specs=[
            pl.BlockSpec((TB, F), lambda i: (i, 0)),   # x tile (pipelined)
            pl.BlockSpec((F, V), lambda i: (0, 0)),    # weight (resident)
            pl.BlockSpec((1, V), lambda i: (0, 0)),    # bias   (resident)
        ],
        out_specs=tuple(out_specs),
        compiler_params=pltpu.CompilerParams(
            dimension_semantics=("parallel",),         # batch axis: v7x 2-TC sharding
            vmem_limit_bytes=vmem_limit,
        ),
        cost_estimate=pl.CostEstimate(
            flops=2 * B * F * V,
            transcendentals=2 * B * V,
            bytes_accessed=itemsize * (B * F + B * V + F * V) + 4 * V,
        ),
    )(sender_input, weight_t, bias2d)

    if not compute_loss:
        return outs[0]
    receiver_output, partial_sums = outs
    loss_mean = jnp.sum(partial_sums) / jnp.float32(B * F)
    # rest_info is {} in the reference mse_loss, nothing to .mean()
    return loss_mean, {}


def _reference_forward(sender_input, weight_t, bias, labels=None):
    """Pure-JAX reference for correctness checking."""
    logits = jnp.dot(sender_input, weight_t,
                     precision=jax.lax.Precision.HIGHEST) + bias[None, :]
    log_probs = jax.nn.log_softmax(logits, axis=1)
    receiver_output = log_probs
    if labels is None:
        return receiver_output
    per_sample = jnp.mean((sender_input - receiver_output) ** 2, axis=1)
    return jnp.mean(per_sample), {}


if __name__ == "__main__":
    # --- small shapes consistent with the module docstring (Linear(F, V), F == V) ---
    B, F, V = 8, 16, 16
    kx, kw, kb = jax.random.split(jax.random.PRNGKey(0), 3)
    x = jax.random.normal(kx, (B, F), dtype=jnp.float32)
    bound = 1.0 / jnp.sqrt(jnp.float32(F))
    w_t = jax.random.uniform(kw, (F, V), jnp.float32, -bound, bound)
    b = jax.random.uniform(kb, (V,), jnp.float32, -bound, bound)
    labels = jnp.zeros((B,), jnp.int32)   # any non-None value triggers the loss branch

    recv_out = symbol_game_gs_forward(x, w_t, b, labels=None)
    jax.block_until_ready(recv_out)
    loss, rest = symbol_game_gs_forward(x, w_t, b, labels=labels)
    jax.block_until_ready(loss)

    ref_recv = _reference_forward(x, w_t, b, None)
    ref_loss, _ = _reference_forward(x, w_t, b, labels)
    assert jnp.allclose(recv_out, ref_recv, atol=1e-5, rtol=1e-5)
    assert jnp.allclose(loss, ref_loss, atol=1e-5, rtol=1e-5)
    assert rest == {}
    assert bool(loss > 0)

    # --- multi-tile + ragged-batch check: exercises the grid, parallel batch axis,
    #     masked cross-tile loss accumulation, and SMEM partial-sum output ---
    B2, F2, V2 = 1000, 128, 128            # B2 is not a multiple of the 512-row tile
    kx2, kw2, kb2 = jax.random.split(jax.random.PRNGKey(1), 3)
    x2 = jax.random.normal(kx2, (B2, F2), dtype=jnp.float32)
    bound2 = 1.0 / jnp.sqrt(jnp.float32(F2))
    w2 = jax.random.uniform(kw2, (F2, V2), jnp.float32, -bound2, bound2)
    b2 = jax.random.uniform(kb2, (V2,), jnp.float32, -bound2, bound2)
    labels2 = jnp.zeros((B2,), jnp.int32)

    recv2 = symbol_game_gs_forward(x2, w2, b2, labels=None)
    loss2, _ = symbol_game_gs_forward(x2, w2, b2, labels=labels2)
    jax.block_until_ready((recv2, loss2))

    ref_recv2 = _reference_forward(x2, w2, b2, None)
    ref_loss2, _ = _reference_forward(x2, w2, b2, labels2)
    assert jnp.allclose(recv2, ref_recv2, atol=5e-4, rtol=1e-4)
    assert jnp.allclose(loss2, ref_loss2, atol=5e-4, rtol=1e-4)

    print("KERNEL_OK")
</pallas_src>

<mosaic_0001>
module attributes {stable_mosaic.version = 11 : i64} {
  func.func @_symbol_game_kernel(%arg0: i32, %arg1: memref<8x16xf32, #tpu.memory_space<vmem>>, %arg2: memref<16x16xf32, #tpu.memory_space<vmem>>, %arg3: memref<1x16xf32, #tpu.memory_space<vmem>>, %arg4: memref<8x16xf32, #tpu.memory_space<vmem>>) attributes {dimension_semantics = [#tpu.dimension_semantics<parallel>], iteration_bounds = array<i64: 1>, scalar_prefetch = 0 : i64, scratch_operands = 0 : i64, tpu.core_type = #tpu.core_type<tc>, window_params = [{transform_indices = @transform_0, window_bounds = array<i64: 8, 16>}, {pipeline_mode = #tpu.pipeline_mode<synchronous>, transform_indices = @transform_1, window_bounds = array<i64: 16, 16>}, {pipeline_mode = #tpu.pipeline_mode<synchronous>, transform_indices = @transform_2, window_bounds = array<i64: 1, 16>}, {transform_indices = @transform_3, window_bounds = array<i64: 8, 16>}]} {
    %c0 = arith.constant 0 : index
    %c0_0 = arith.constant 0 : index
    %0 = vector.load %arg1[%c0, %c0_0] : memref<8x16xf32, #tpu.memory_space<vmem>>, vector<8x16xf32>
    %c0_1 = arith.constant 0 : index
    %c0_2 = arith.constant 0 : index
    %1 = vector.load %arg2[%c0_1, %c0_2] : memref<16x16xf32, #tpu.memory_space<vmem>>, vector<16x16xf32>
    %c0_3 = arith.constant 0 : index
    %c0_4 = arith.constant 0 : index
    %2 = vector.load %arg3[%c0_3, %c0_4] : memref<1x16xf32, #tpu.memory_space<vmem>>, vector<1x16xf32>
    %cst = arith.constant dense<0.000000e+00> : vector<8x16xf32>
    %3 = tpu.matmul %0, %1, %cst {dimension_numbers = #tpu.dot_dimension_numbers<[1], [0], [0], [1], [0, 0, 1, 1], [], []>} : vector<8x16xf32>, vector<16x16xf32>, vector<8x16xf32> -> vector<8x16xf32>
    %4 = vector.broadcast %2 : vector<1x16xf32> to vector<8x16xf32>
    %5 = arith.addf %3, %4 : vector<8x16xf32>
    %cst_5 = arith.constant dense<0xFF800000> : vector<8xf32>
    %6 = vector.multi_reduction <maximumf>, %5, %cst_5 [1] : vector<8x16xf32> to vector<8xf32>
    %7 = vector.shape_cast %6 : vector<8xf32> to vector<8x1xf32>
    %8 = vector.broadcast %7 : vector<8x1xf32> to vector<8x16xf32>
    %9 = arith.subf %5, %8 : vector<8x16xf32>
    %10 = math.exp %9 : vector<8x16xf32>
    %cst_6 = arith.constant dense<0.000000e+00> : vector<8xf32>
    %11 = vector.multi_reduction <add>, %10, %cst_6 [1] : vector<8x16xf32> to vector<8xf32>
    %12 = vector.shape_cast %11 : vector<8xf32> to vector<8x1xf32>
    %13 = math.log %12 : vector<8x1xf32>
    %14 = vector.broadcast %13 : vector<8x1xf32> to vector<8x16xf32>
    %15 = arith.subf %9, %14 : vector<8x16xf32>
    %c0_7 = arith.constant 0 : index
    %c0_8 = arith.constant 0 : index
    %16 = vector.load %arg4[%c0_7, %c0_8] : memref<8x16xf32, #tpu.memory_space<vmem>>, vector<8x16xf32>
    tpu.vector_store %arg4[%c0_7, %c0_8], %15 {strides = array<i32>} : memref<8x16xf32, #tpu.memory_space<vmem>>, vector<8x16xf32>,
    return
  }
  func.func @transform_0(%arg0: i32) -> (i32, i32) {
    %c0_i32 = arith.constant 0 : i32
    %c0_i32_0 = arith.constant 0 : i32
    return %arg0, %c0_i32 : i32, i32
  }
  func.func @transform_1(%arg0: i32) -> (i32, i32) {
    %c0_i32 = arith.constant 0 : i32
    %c0_i32_0 = arith.constant 0 : i32
    %c0_i32_1 = arith.constant 0 : i32
    return %c0_i32, %c0_i32_0 : i32, i32
  }
  func.func @transform_2(%arg0: i32) -> (i32, i32) {
    %c0_i32 = arith.constant 0 : i32
    %c0_i32_0 = arith.constant 0 : i32
    %c0_i32_1 = arith.constant 0 : i32
    return %c0_i32, %c0_i32_0 : i32, i32
  }
  func.func @transform_3(%arg0: i32) -> (i32, i32) {
    %c0_i32 = arith.constant 0 : i32
    %c0_i32_0 = arith.constant 0 : i32
    return %arg0, %c0_i32 : i32, i32
  }
}

</mosaic_0001>

<llo_original>
// kernel: tpu_custom_call.1
$region0: #{tpu_custom_call.1}
  #allocation0 [shape = 'u32[]', space=smem, size = 0x4, offset = 0x4, fixed_abs, tag = 'smem constant byte address 0x4 - core index']
  #allocation1 [shape = 'u32[72,128]{1,0:T(1,128)}', space=vmem, size = 0x9000, scoped, tag = 'internal scratch']
  %s0 = inlined_call_operand.hbm [shape: f32[8,16], index: 0, kind: input, shape index: {}]
  %s1 = inlined_call_operand.hbm [shape: f32[16,16], index: 1, kind: input, shape index: {}]
  %s2 = inlined_call_operand.vmem [shape: f32[1,16], index: 2, kind: input, shape index: {}]
  %s3 = inlined_call_operand.hbm [shape: f32[8,16], index: 3, kind: output, shape index: {}]
  %s4 = sld [smem:[#allocation0]]
  $region30: #{tpu_custom_call.1} parent=0
    _
  %s6 = ssub.s32 1, %s4
  %s7 = scalar_select 0, %s6, %s4
  $region1: #{tpu_custom_call.1} parent=0
    #allocation2 [shape = 'u8[4096]{0}', space=vmem, size = 0x1000, scoped, tag = 'input window, operand 0, single buffered']
    #allocation3 [shape = 's32[1]{0}', space=sflag, size = 0x4, scoped, tag = 'scoped memory for tpu_custom_call.1']
    #allocation4 [shape = 's32[1]{0}', space=sflag, size = 0x4, scoped, tag = 'scoped memory for tpu_custom_call.1']
    #allocation5 [shape = 'u8[8192]{0}', space=vmem, size = 0x2000, scoped, tag = 'input window, operand 1, single buffered']
    #allocation6 [shape = 's32[1]{0}', space=sflag, size = 0x4, scoped, tag = 'scoped memory for tpu_custom_call.1']
    #allocation7 [shape = 'u8[4096]{0}', space=vmem, size = 0x1000, scoped, tag = 'output window, operand 0, single buffered']
    %8 = vsyncpa [#allocation3], 0
    %9 = vsyncpa [#allocation6], 0
    %10 = vsyncpa [#allocation4], 0
    // Predicated region
    $region2: #{tpu_custom_call.1} parent=1 // pred_check
      _
    $region3: #{tpu_custom_call.1} parent=1 // pred_check_branch
      %12 = sbr.rel (0) target = $region5
    $region4: #{tpu_custom_call.1} parent=1 // pred_region
      %14 = vsyncadd [#allocation3], 0
      %s16 = sshll.u32 %s0, 4
      %s17 = int_to_ptr.hbm [resolvable:$true] %s16
      %s18 = sshll.u32 [#allocation2], 4
      %s19 = int_to_ptr.vmem [resolvable:$true] %s18
      %21 = dma.hbm_to_vmem [thread:$0]  %s17, 128, %s19, [#allocation3]
    $region5: #{tpu_custom_call.1} parent=1 // pred_fallthru
      _
    // Predicated region
    $region6: #{tpu_custom_call.1} parent=1 // pred_check
      _
    $region7: #{tpu_custom_call.1} parent=1 // pred_check_branch
      %23 = sbr.rel (0) target = $region9
    $region8: #{tpu_custom_call.1} parent=1 // pred_region
      %25 = vsyncadd [#allocation6], 0
      %s26 = sshll.u32 %s1, 4
      %s27 = int_to_ptr.hbm [resolvable:$true] %s26
      %s28 = sshll.u32 [#allocation5], 4
      %s29 = int_to_ptr.vmem [resolvable:$true] %s28
      %34 = dma.hbm_to_vmem [thread:$0]  %s27, 256, %s29, [#allocation6], 128, 128, 8
    $region9: #{tpu_custom_call.1} parent=1 // pred_fallthru
      _
    // Predicated region
    $region10: #{tpu_custom_call.1} parent=1 // pred_check
      _
    $region11: #{tpu_custom_call.1} parent=1 // pred_check_branch
      %36 = sbr.rel (0) target = $region13
    $region12: #{tpu_custom_call.1} parent=1 // pred_region
      _
    $region13: #{tpu_custom_call.1} parent=1 // pred_fallthru
      _
    // Predicated region
    $region14: #{tpu_custom_call.1} parent=1 // pred_check
      _
    $region15: #{tpu_custom_call.1} parent=1 // pred_check_branch
      %38 = sbr.rel (0) target = $region17
    $region16: #{tpu_custom_call.1} parent=1 // pred_region
      %40 = dma.done [#allocation3], 128
    $region17: #{tpu_custom_call.1} parent=1 // pred_fallthru
      _
    // Predicated region
    $region18: #{tpu_custom_call.1} parent=1 // pred_check
      _
    $region19: #{tpu_custom_call.1} parent=1 // pred_check_branch
      %42 = sbr.rel (0) target = $region21
    $region20: #{tpu_custom_call.1} parent=1 // pred_region
      %44 = dma.done [#allocation6], 256
    $region21: #{tpu_custom_call.1} parent=1 // pred_fallthru
      _
    %v45 = vld [vmem:[#allocation2] sm:$0xff]
    %v46 = vld [vmem:[#allocation5] sm:$0xff]
    %v47 = vld [vmem:[#allocation5 + $0x8] sm:$0xff]
    %v48 = vld [vmem:[%s2] sm:$0x1]
    %v50 = vperm.slane %v48, 0
    %vm52 = vcmask 130048
    %v54 = vsel %vm52, %v45, 0
    %56 = vmatpush.msra.mxu0 0.0
    %57 = vmatpush.msra.mxu0 0.0
    %58 = vmatpush.msra.mxu0 0.0
    %59 = vmatpush.msra.mxu0 0.0
    %60 = vmatpush.msra.mxu0 0.0
    %61 = vmatpush.msra.mxu0 0.0
    %62 = vmatpush.msra.mxu0 0.0
    %63 = vmatpush.msra.mxu0 0.0
    %64 = vmatpush.msra.mxu0 0.0
    %65 = vmatpush.msra.mxu0 0.0
    %66 = vmatpush.msra.mxu0 0.0
    %67 = vmatpush.msra.mxu0 0.0
    %68 = vmatpush.msra.mxu0 0.0
    %69 = vmatpush.msra.mxu0 0.0
    %70 = vmatpush.msra.mxu0 %v47
    %71 = vmatpush.msra.mxu0 %v46
    %72 = vmatmul.f32.gmra.mxu0 %v54
    %v73 = vpop.f32.mrf.mxu0
    %v74 = vadd.f32 %v50, %v73
    %75 = vdwg.mxu0
    %v76 = vsel %vm52, %v74, -inf
    %77 = vmax.xlane.f32.xlu0 %v76
    %v78 = vpop.xlane.xlu0 %77
    %v79 = vsub.f32 %v74, %v78
    %v80 = vmul.f32 %v79, 1.442695
    %v81 = vpow.pop %v80
    %v82 = vsel %vm52, %v81, 0.0
    %83 = vadd.xlane.f32.xlu0 %v82
    %v84 = vpop.xlane.xlu0 %83
    %v85 = vlog2.pop %v84
    %v86 = vmul.f32 %v85, 0.6931472
    %v87 = vsub.f32 %v79, %v86
    %88 = vst.msk [vmem:[#allocation7] sm:$0xff] %vm52, %v87
    // Predicated region
    $region22: #{tpu_custom_call.1} parent=1 // pred_check
      _
    $region23: #{tpu_custom_call.1} parent=1 // pred_check_branch
      %90 = sbr.rel (0) target = $region25
    $region24: #{tpu_custom_call.1} parent=1 // pred_region
      %92 = vsyncadd [#allocation4], 0
      %s94 = sshll.u32 [#allocation7], 4
      %s95 = int_to_ptr.vmem [resolvable:$true] %s94
      %s96 = sshll.u32 %s3, 4
      %s97 = int_to_ptr.hbm [resolvable:$true] %s96
      %99 = dma.vmem_to_hbm [thread:$0]  %s95, 128, %s97, [#allocation4]
    $region25: #{tpu_custom_call.1} parent=1 // pred_fallthru
      _
    // Predicated region
    $region26: #{tpu_custom_call.1} parent=1 // pred_check
      _
    $region27: #{tpu_custom_call.1} parent=1 // pred_check_branch
      %101 = sbr.rel (0) target = $region29
    $region28: #{tpu_custom_call.1} parent=1 // pred_region
      %103 = dma.done [#allocation4], 128
    $region29: #{tpu_custom_call.1} parent=1 // pred_fallthru
      _
    %104 = vsyncpa [#allocation3], 1
    %105 = vsyncpa [#allocation6], 1
    %106 = vsyncpa [#allocation4], 1

</llo_original>
